<compile_context>
chip_gen: v5e
topology: v5e:2x2
jax: 0.10.0
libtpu: 0.0.40
codegen_flags: <defaults>
</compile_context>

<pallas_src>
import functools
import math

import jax
import jax.numpy as jnp
import numpy as np
from jax.experimental import pallas as pl
from jax.experimental.pallas import tpu as pltpu

_LANES = 128
_SUBLANES = 8
# (4096, 128) f32 tile = 2 MiB per pipeline buffer.  8192 would shave another
# ~10-15% of per-step overhead on v7x but risks the range kernel (which keeps
# a, b, d, r live as full-block temporaries) exceeding scoped VMEM.
_MAX_TILE_ROWS = 4096
_VMEM_LIMIT_BYTES = 32 * 1024 * 1024
_MIN_PALLAS_ELEMS = 1024   # below this, plain jnp (fused under jit) is cheaper


# ---------------------------------------------------------------------------
# Layout planning / plumbing
# ---------------------------------------------------------------------------
def _plan(n, max_tile_rows=_MAX_TILE_ROWS):
    """Layout plan for n elements as a (rows, 128) slab.

    Returns (rows, tile_rows, num_tiles, splits, tiles_per_split,
             padded, partial_block, has_overrun).
    """
    rows = max(_SUBLANES, -(-n // _LANES))
    tile_rows = min(max_tile_rows, (rows // _SUBLANES) * _SUBLANES)
    num_tiles = -(-rows // tile_rows)
    splits = 2 if num_tiles >= 2 else 1            # v7x: one accumulator per TC
    tiles_per_split = -(-num_tiles // splits)
    padded = rows * _LANES != n                    # zero-padded tail lanes
    partial_block = rows % tile_rows != 0          # garbage rows in last block
    has_overrun = splits * tiles_per_split != num_tiles
    return (rows, tile_rows, num_tiles, splits, tiles_per_split,
            padded, partial_block, has_overrun)


def _to_slab(x, rows):
    """Row-major flatten to (rows, 128).

    Slab-aligned tensors (n == rows*128) are a free reshape (no HBM copy);
    only unaligned / sub-(8,128) tensors pay a small pad copy.
    """
    flat = jnp.ravel(x)
    total = rows * _LANES
    if flat.shape[0] != total:
        flat = jnp.pad(flat, (0, total - flat.shape[0]))
    return flat.reshape(rows, _LANES)


def _tile_mask(shape, tile_idx, n_valid):
    ridx = jax.lax.broadcasted_iota(jnp.int32, shape, 0)
    lidx = jax.lax.broadcasted_iota(jnp.int32, shape, 1)
    idx = tile_idx * (shape[0] * _LANES) + ridx * _LANES + lidx
    return idx < n_valid


def _fold(x):
    # (tile_rows, 128) -> (tile_rows//8, 8, 128): layout-preserving split of
    # the sublane axis so the reduce over axis 0 is pure VPU work.
    return x.reshape(x.shape[0] // _SUBLANES, _SUBLANES, _LANES)


def _apply_pow(r, p):
    if p == 1.0:
        return r
    if float(p).is_integer() and 2.0 <= p <= 8.0:
        out = r
        for _ in range(int(p) - 1):
            out = out * r                      # VALU, avoids EUP exp/log path
        return out
    return jnp.power(r, p)


# ---------------------------------------------------------------------------
# Kernels
# ---------------------------------------------------------------------------
def _mse_kernel(a_ref, b_ref, acc_ref, *, n_valid, num_tiles, tiles_per_split,
                need_mask, has_overrun):
    c = pl.program_id(0)
    j = pl.program_id(1)

    @pl.when(j == 0)
    def _():
        acc_ref[...] = jnp.zeros_like(acc_ref)

    a = a_ref[...].astype(jnp.float32)
    b = b_ref[...].astype(jnp.float32)
    d = a - b
    v = d * d

    def _acc(val):
        acc_ref[0] = acc_ref[0] + _fold(val).sum(axis=0)

    if need_mask or has_overrun:
        g = c * tiles_per_split + j
        limit = num_tiles - 1 if need_mask else num_tiles

        @pl.when(g < limit)
        def _():
            _acc(v)

        if need_mask:
            # Only the LAST tile can contain garbage rows (partial block);
            # zero-padded tail lanes already contribute 0 to (a-b)^2.
            @pl.when(g == num_tiles - 1)
            def _():
                mask = _tile_mask(v.shape, num_tiles - 1, n_valid)
                _acc(jnp.where(mask, v, 0.0))
    else:
        _acc(v)


def _range_kernel(a_ref, b_ref, *acc_refs, thresh, p, n_valid, num_tiles,
                  tiles_per_split, need_mask, has_overrun, compute_max):
    """One HBM pass over (a, b) producing lane-wise partials of:
       sum(relu(a-b-thresh)^p), sum(a), sum(b)[, max(a-b)]."""
    if compute_max:
        racc, aacc, bacc, macc = acc_refs
    else:
        racc, aacc, bacc = acc_refs
        macc = None

    c = pl.program_id(0)
    j = pl.program_id(1)

    @pl.when(j == 0)
    def _():
        racc[...] = jnp.zeros_like(racc)
        aacc[...] = jnp.zeros_like(aacc)
        bacc[...] = jnp.zeros_like(bacc)
        if compute_max:
            macc[...] = jnp.full(macc.shape, -jnp.inf, macc.dtype)

    a = a_ref[...].astype(jnp.float32)
    b = b_ref[...].astype(jnp.float32)
    d = a - b
    r = _apply_pow(jnp.maximum(d - thresh, 0.0), p)

    def _acc(rv, av, bv, dv):
        racc[0] = racc[0] + _fold(rv).sum(axis=0)
        aacc[0] = aacc[0] + _fold(av).sum(axis=0)
        bacc[0] = bacc[0] + _fold(bv).sum(axis=0)
        if compute_max:
            macc[0] = jnp.maximum(macc[0], _fold(dv).max(axis=0))

    if need_mask or has_overrun:
        g = c * tiles_per_split + j
        limit = num_tiles - 1 if need_mask else num_tiles

        @pl.when(g < limit)
        def _():
            _acc(r, a, b, d)

        if need_mask:
            # All invalid data (partial-block garbage rows AND the zero-padded
            # tail lanes) lives in the last tile only; masking here keeps the
            # result correct for any thresh sign and keeps max() exact.
            @pl.when(g == num_tiles - 1)
            def _():
                mask = _tile_mask(r.shape, num_tiles - 1, n_valid)
                _acc(jnp.where(mask, r, 0.0),
                     jnp.where(mask, a, 0.0),
                     jnp.where(mask, b, 0.0),
                     jnp.where(mask, d, -jnp.inf))
    else:
        _acc(r, a, b, d)


# ---------------------------------------------------------------------------
# pallas_call wrappers
# ---------------------------------------------------------------------------
def _launch(kernel, n_out, a2, b2, tile_rows, num_tiles, splits,
            tiles_per_split, has_overrun):
    if has_overrun:
        # Odd tile count split across both cores: clamp the block index on the
        # overrun step (its accumulation is skipped inside the kernel).
        in_map = lambda c, j: (jnp.minimum(c * tiles_per_split + j,
                                           num_tiles - 1), 0)
    else:
        in_map = lambda c, j: (c * tiles_per_split + j, 0)

    acc_shape = jax.ShapeDtypeStruct((splits, _SUBLANES, _LANES), jnp.float32)
    acc_spec = pl.BlockSpec((1, _SUBLANES, _LANES), lambda c, j: (c, 0, 0))
    out_shape = acc_shape if n_out == 1 else (acc_shape,) * n_out
    out_specs = acc_spec if n_out == 1 else (acc_spec,) * n_out

    return pl.pallas_call(
        kernel,
        out_shape=out_shape,
        grid_spec=pltpu.PrefetchScalarGridSpec(
            num_scalar_prefetch=0,
            grid=(splits, tiles_per_split),
            in_specs=[pl.BlockSpec((tile_rows, _LANES), in_map),
                      pl.BlockSpec((tile_rows, _LANES), in_map)],
            out_specs=out_specs,
        ),
        compiler_params=pltpu.CompilerParams(
            dimension_semantics=("parallel", "arbitrary"),
            vmem_limit_bytes=_VMEM_LIMIT_BYTES),
    )(a2, b2)


def _mse_sum_pallas(a, b, max_tile_rows=_MAX_TILE_ROWS):
    n = int(a.size)
    (rows, tile_rows, num_tiles, splits, tps,
     _padded, partial, overrun) = _plan(n, max_tile_rows)
    kernel = functools.partial(
        _mse_kernel, n_valid=n, num_tiles=num_tiles, tiles_per_split=tps,
        need_mask=partial, has_overrun=overrun)
    acc = _launch(kernel, 1, _to_slab(a, rows), _to_slab(b, rows),
                  tile_rows, num_tiles, splits, tps, overrun)
    return jnp.sum(acc)


def _range_stats_pallas(a, b, thresh, p, compute_max=True,
                        max_tile_rows=_MAX_TILE_ROWS):
    n = int(a.size)
    (rows, tile_rows, num_tiles, splits, tps,
     padded, partial, overrun) = _plan(n, max_tile_rows)
    kernel = functools.partial(
        _range_kernel, thresh=float(thresh), p=float(p), n_valid=n,
        num_tiles=num_tiles, tiles_per_split=tps,
        need_mask=(padded or partial), has_overrun=overrun,
        compute_max=compute_max)
    n_out = 4 if compute_max else 3
    res = _launch(kernel, n_out, _to_slab(a, rows), _to_slab(b, rows),
                  tile_rows, num_tiles, splits, tps, overrun)
    if compute_max:
        racc, aacc, bacc, macc = res
        return jnp.sum(racc), jnp.sum(aacc), jnp.sum(bacc), jnp.max(macc)
    racc, aacc, bacc = res
    return jnp.sum(racc), jnp.sum(aacc), jnp.sum(bacc), None


def _mse_sum(a, b):
    if a.size < _MIN_PALLAS_ELEMS:
        d = a.astype(jnp.float32) - b.astype(jnp.float32)
        return jnp.sum(d * d)
    return _mse_sum_pallas(a, b)


def _range_stats(a, b, thresh, p, compute_max=True):
    if a.size < _MIN_PALLAS_ELEMS:
        a32 = a.astype(jnp.float32)
        b32 = b.astype(jnp.float32)
        d = a32 - b32
        r = _apply_pow(jnp.maximum(d - thresh, 0.0), p)
        mx = jnp.max(d) if compute_max else None
        return jnp.sum(r), jnp.sum(a32), jnp.sum(b32), mx
    return _range_stats_pallas(a, b, thresh, p, compute_max=compute_max)


# ---------------------------------------------------------------------------
# Module
# ---------------------------------------------------------------------------
class PotentialLossPallas:
    """JAX/Pallas port of PotentialLoss.forward (criterion = MSE, mean)."""

    def __init__(self, criterion=None, alpha=(1.0, 1.0, 1.0), step_size=10,
                 eps=0.02, lmin=0, p=1, a=8, w=4, scale_momentum=0.9,
                 scale_coeff=1.1, w_scale_m=1.0, a_scale_m=1.0,
                 l_eps=0.001, r_eps=0.001):
        # TODO(synk): only the MSE-mean criterion (nn.MSELoss()) is implemented
        # in-kernel; an arbitrary `criterion` callable has no Pallas equivalent.
        self.alpha = tuple(float(x) for x in alpha)
        self.lmin = float(math.log2(lmin + 1))            # log2(lmin + 1)
        self.eps = float(eps)
        self.p = float(p)
        self.at = float(math.log2(2.0 ** a - 1.0))        # log2(2^a - 1)
        self.wt = float(math.log2(2.0 ** (w - 1) - 1.0))  # log2(2^(w-1) - 1)
        self.l_eps = float(l_eps)
        self.r_eps = float(r_eps)
        self.scale_momentum = float(scale_momentum)
        self.training = True

        # Host-side state mirroring the torch buffers / attributes.
        self._sm_state = None                                   # (a, w, r)_sm
        self._scale_state = tuple(jnp.asarray(1.0, jnp.float32) for _ in range(3))
        self.w_scale, self.a_scale, self.r_scale = self._scale_state
        self.aloss_sm = self.wloss_sm = self.rloss_sm = None

        # Whole forward (pallas kernels + scalar epilogue + EMA) in one jit.
        self._fwd = jax.jit(self._forward_impl,
                            static_argnames=("first_call", "is_training"))

    # -- jitted forward ------------------------------------------------------
    def _forward_impl(self, out_0, out_1, out_2, out_3, out_4, target,
                      sm_state, scale_state, *, first_call, is_training):
        # criterion(out_0, target) == nn.MSELoss() (mean reduction)
        base_loss = _mse_sum(out_0, target) / out_0.size
        x = jnp.maximum(0.0, base_loss - self.lmin * (1.0 + self.eps))
        rloss = _apply_pow(x, self.p)

        # Weight / activation range losses + fused side statistics
        # (one HBM pass per tensor pair).
        nw = out_4.size
        w_rsum, w_sum4, w_sum3, w_maxd = _range_stats(
            out_4, out_3, self.wt - self.l_eps, self.p, compute_max=True)
        wloss = w_rsum / nw

        na = out_2.size
        a_rsum, a_sum2, a_sum1, _ = _range_stats(
            out_2, out_1, self.at - self.l_eps, self.p, compute_max=False)
        aloss = a_rsum / na

        if is_training:
            if first_call:
                a_sm, w_sm, r_sm = aloss, wloss, rloss
            else:
                m = self.scale_momentum
                a_sm = m * sm_state[0] + (1.0 - m) * aloss
                w_sm = m * sm_state[1] + (1.0 - m) * wloss
                r_sm = m * sm_state[2] + (1.0 - m) * rloss
            # torch detaches these scales; this is a forward-only port.
            w_scale = 1.0 / (w_sm + self.r_eps)
            a_scale = 1.0 / (a_sm + self.r_eps)
            r_scale = 1.0 / (r_sm + self.r_eps)
        else:
            a_sm, w_sm, r_sm = sm_state
            w_scale, a_scale, r_scale = scale_state

        ploss = (self.alpha[0] * wloss * w_scale
                 + self.alpha[1] * aloss * a_scale
                 + self.alpha[2] * rloss * r_scale)

        stats = {
            "base_loss": base_loss,
            "wloss": wloss, "aloss": aloss, "rloss": rloss,
            "s_weight_loss": -(w_sum3 / nw),
            "q_weight_loss": w_sum4 / nw,
            "s_act_loss": -(a_sum1 / na),
            "q_act_loss": a_sum2 / na,
            "weight_reg_loss": w_maxd + 1.0,
        }
        return ploss, (a_sm, w_sm, r_sm), (w_scale, a_scale, r_scale), stats

    # -- public API ----------------------------------------------------------
    def __call__(self, output, target):
        out_0, out_1, out_2, out_3, out_4 = output
        first_call = self._sm_state is None
        sm_state = (self._sm_state if not first_call
                    else tuple(jnp.asarray(0.0, jnp.float32) for _ in range(3)))

        ploss, sm_new, scale_new, stats = self._fwd(
            out_0, out_1, out_2, out_3, out_4, target, sm_state,
            self._scale_state, first_call=first_call,
            is_training=self.training)

        if self.training:
            self._sm_state = sm_new
            self._scale_state = scale_new
            self.aloss_sm, self.wloss_sm, self.rloss_sm = sm_new
        self.w_scale, self.a_scale, self.r_scale = self._scale_state

        # Side attributes the torch module stashes on self.
        self.base_loss = stats["base_loss"]
        self.wloss = stats["wloss"]
        self.aloss = stats["aloss"]
        self.rloss = stats["rloss"]
        self.s_weight_loss = stats["s_weight_loss"]
        self.q_weight_loss = stats["q_weight_loss"]
        self.s_act_loss = stats["s_act_loss"]
        self.q_act_loss = stats["q_act_loss"]
        self.weight_reg_loss = stats["weight_reg_loss"]
        return ploss


def _reference(output, target, mod):
    """Pure-JAX reference of the same (first-call, training) forward."""
    out_0, out_1, out_2, out_3, out_4 = output
    base = jnp.mean((out_0 - target) ** 2)
    x = jnp.maximum(0.0, base - mod.lmin * (1.0 + mod.eps))
    wloss = jnp.mean(jnp.maximum(0.0, out_4 - out_3 - (mod.wt - mod.l_eps)) ** mod.p)
    aloss = jnp.mean(jnp.maximum(0.0, out_2 - out_1 - (mod.at - mod.l_eps)) ** mod.p)
    rloss = x ** mod.p
    return (mod.alpha[0] * wloss / (wloss + mod.r_eps)
            + mod.alpha[1] * aloss / (aloss + mod.r_eps)
            + mod.alpha[2] * rloss / (rloss + mod.r_eps))


if __name__ == "__main__":
    key = jax.random.PRNGKey(0)
    k0, kt, k1, k2, k3, k4, k5, k6 = jax.random.split(key, 8)

    # layout: out_0 / target in NCHW: (N=2, C=4, H=16, W=16)
    out_0 = jax.random.normal(k0, (2, 4, 16, 16), jnp.float32)
    target = jax.random.normal(kt, (2, 4, 16, 16), jnp.float32)
    # log activation scale / quant-range (per channel & position)
    log_act_s = 0.5 * jax.random.normal(k1, (4, 16, 16), jnp.float32)
    log_act_q = log_act_s + 4.0 * jnp.abs(
        jax.random.normal(k2, (4, 16, 16), jnp.float32)) + 5.0
    # log weight scale / log |w| range for a 4x4x3x3 conv weight
    log_wght_s = 0.5 * jax.random.normal(k3, (4, 4, 3, 3), jnp.float32)
    log_w = log_wght_s + 2.0 * jnp.abs(
        jax.random.normal(k4, (4, 4, 3, 3), jnp.float32)) + 1.5

    outputs = (out_0, log_act_s, log_act_q, log_wght_s, log_w)

    loss_mod = PotentialLossPallas()
    ploss = jax.block_until_ready(loss_mod(outputs, target))

    ref = jax.block_until_ready(_reference(outputs, target, loss_mod))
    np.testing.assert_allclose(np.asarray(ploss), np.asarray(ref),
                               rtol=1e-5, atol=1e-5)

    # Fused side-statistics checks.
    np.testing.assert_allclose(np.asarray(loss_mod.weight_reg_loss),
                               np.asarray(jnp.max(log_w - log_wght_s) + 1.0),
                               rtol=1e-5, atol=1e-5)
    np.testing.assert_allclose(np.asarray(loss_mod.s_act_loss),
                               np.asarray(-jnp.mean(log_act_s)),
                               rtol=1e-5, atol=1e-5)
    np.testing.assert_allclose(np.asarray(loss_mod.q_weight_loss),
                               np.asarray(jnp.mean(log_w)),
                               rtol=1e-5, atol=1e-5)

    # Second call exercises the EMA-smoothing (rloss_sm is not None) branch;
    # with identical inputs the smoothed scales (hence ploss) are unchanged.
    ploss2 = jax.block_until_ready(loss_mod(outputs, target))
    np.testing.assert_allclose(np.asarray(ploss2), np.asarray(ploss),
                               rtol=1e-5, atol=1e-5)

    # Pallas-path stress checks: unaligned size (6195 elems -> 49 rows),
    # multi-tile, partial/masked last block, even and odd (overrun-step)
    # tile counts via a reduced tile cap.
    xa = jax.random.normal(k5, (3, 5, 413), jnp.float32)
    xb = jax.random.normal(k6, (3, 5, 413), jnp.float32)
    mse_ref = jnp.sum((xa - xb) ** 2)
    r_ref = jnp.sum(jnp.maximum(xa - xb - 0.5, 0.0))
    for cap in (16, 24):   # 4 tiles (even split) / 3 tiles (odd -> overrun)
        mse_p = _mse_sum_pallas(xa, xb, max_tile_rows=cap)
        np.testing.assert_allclose(np.asarray(mse_p), np.asarray(mse_ref),
                                   rtol=1e-4, atol=5e-3)
        rs, sa, sb, mx = _range_stats_pallas(xa, xb, 0.5, 1.0,
                                             compute_max=True,
                                             max_tile_rows=cap)
        np.testing.assert_allclose(np.asarray(rs), np.asarray(r_ref),
                                   rtol=1e-4, atol=5e-3)
        np.testing.assert_allclose(np.asarray(sa), np.asarray(jnp.sum(xa)),
                                   rtol=1e-4, atol=5e-3)
        np.testing.assert_allclose(np.asarray(sb), np.asarray(jnp.sum(xb)),
                                   rtol=1e-4, atol=5e-3)
        np.testing.assert_allclose(np.asarray(mx),
                                   np.asarray(jnp.max(xa - xb)),
                                   rtol=1e-6, atol=1e-6)

    print("KERNEL_OK")
</pallas_src>

<mosaic_0001>
module attributes {stable_mosaic.version = 11 : i64} {
  func.func @_range_kernel(%arg0: i32, %arg1: i32, %arg2: memref<8x128xf32, #tpu.memory_space<vmem>>, %arg3: memref<8x128xf32, #tpu.memory_space<vmem>>, %arg4: memref<1x8x128xf32, #tpu.memory_space<vmem>>, %arg5: memref<1x8x128xf32, #tpu.memory_space<vmem>>, %arg6: memref<1x8x128xf32, #tpu.memory_space<vmem>>) attributes {dimension_semantics = [#tpu.dimension_semantics<parallel>, #tpu.dimension_semantics<arbitrary>], iteration_bounds = array<i64: 1, 1>, scalar_prefetch = 0 : i64, scratch_operands = 0 : i64, tpu.core_type = #tpu.core_type<tc>, window_params = [{transform_indices = @transform_0, window_bounds = array<i64: 8, 128>}, {transform_indices = @transform_1, window_bounds = array<i64: 8, 128>}, {transform_indices = @transform_2, window_bounds = array<i64: 1, 8, 128>}, {transform_indices = @transform_3, window_bounds = array<i64: 1, 8, 128>}, {transform_indices = @transform_4, window_bounds = array<i64: 1, 8, 128>}]} {
    %c0_i32 = arith.constant 0 : i32
    %0 = arith.cmpi eq, %arg1, %c0_i32 : i32
    %1 = arith.extui %0 : i1 to i32
    %c0_i32_0 = arith.constant 0 : i32
    %2 = arith.cmpi ne, %1, %c0_i32_0 : i32
    scf.if %2 {
      %cst_26 = arith.constant 0.000000e+00 : f32
      %34 = vector.broadcast %cst_26 : f32 to vector<1x8x128xf32>
      %c0_27 = arith.constant 0 : index
      %c0_28 = arith.constant 0 : index
      %c0_29 = arith.constant 0 : index
      %35 = vector.load %arg4[%c0_27, %c0_28, %c0_29] : memref<1x8x128xf32, #tpu.memory_space<vmem>>, vector<1x8x128xf32>
      tpu.vector_store %arg4[%c0_27, %c0_28, %c0_29], %34 {strides = array<i32>} : memref<1x8x128xf32, #tpu.memory_space<vmem>>, vector<1x8x128xf32>,
      %cst_30 = arith.constant 0.000000e+00 : f32
      %36 = vector.broadcast %cst_30 : f32 to vector<1x8x128xf32>
      %c0_31 = arith.constant 0 : index
      %c0_32 = arith.constant 0 : index
      %c0_33 = arith.constant 0 : index
      %37 = vector.load %arg5[%c0_31, %c0_32, %c0_33] : memref<1x8x128xf32, #tpu.memory_space<vmem>>, vector<1x8x128xf32>
      tpu.vector_store %arg5[%c0_31, %c0_32, %c0_33], %36 {strides = array<i32>} : memref<1x8x128xf32, #tpu.memory_space<vmem>>, vector<1x8x128xf32>,
      %cst_34 = arith.constant 0.000000e+00 : f32
      %38 = vector.broadcast %cst_34 : f32 to vector<1x8x128xf32>
      %c0_35 = arith.constant 0 : index
      %c0_36 = arith.constant 0 : index
      %c0_37 = arith.constant 0 : index
      %39 = vector.load %arg6[%c0_35, %c0_36, %c0_37] : memref<1x8x128xf32, #tpu.memory_space<vmem>>, vector<1x8x128xf32>
      tpu.vector_store %arg6[%c0_35, %c0_36, %c0_37], %38 {strides = array<i32>} : memref<1x8x128xf32, #tpu.memory_space<vmem>>, vector<1x8x128xf32>,
    } else {
    }
    %c0 = arith.constant 0 : index
    %c0_1 = arith.constant 0 : index
    %3 = vector.load %arg2[%c0, %c0_1] : memref<8x128xf32, #tpu.memory_space<vmem>>, vector<8x128xf32>
    %c0_2 = arith.constant 0 : index
    %c0_3 = arith.constant 0 : index
    %4 = vector.load %arg3[%c0_2, %c0_3] : memref<8x128xf32, #tpu.memory_space<vmem>>, vector<8x128xf32>
    %5 = arith.subf %3, %4 : vector<8x128xf32>
    %cst = arith.constant 7.99335337 : f32
    %6 = vector.broadcast %cst : f32 to vector<8x128xf32>
    %7 = arith.subf %5, %6 : vector<8x128xf32>
    %cst_4 = arith.constant 0.000000e+00 : f32
    %8 = vector.broadcast %cst_4 : f32 to vector<8x128xf32>
    %9 = arith.maximumf %7, %8 : vector<8x128xf32>
    %c0_5 = arith.constant 0 : index
    %c0_6 = arith.constant 0 : index
    %c0_7 = arith.constant 0 : index
    %10 = vector.load %arg4[%c0_5, %c0_6, %c0_7] : memref<1x8x128xf32, #tpu.memory_space<vmem>>, vector<1x8x128xf32>
    %11 = vector.shape_cast %10 : vector<1x8x128xf32> to vector<8x128xf32>
    %12 = vector.shape_cast %9 : vector<8x128xf32> to vector<1x8x128xf32>
    %cst_8 = arith.constant dense<0.000000e+00> : vector<8x128xf32>
    %13 = vector.multi_reduction <add>, %12, %cst_8 [0] : vector<1x8x128xf32> to vector<8x128xf32>
    %14 = arith.addf %11, %13 : vector<8x128xf32>
    %c0_9 = arith.constant 0 : index
    %c0_10 = arith.constant 0 : index
    %c0_11 = arith.constant 0 : index
    %15 = vector.load %arg4[%c0_9, %c0_10, %c0_11] : memref<1x8x128xf32, #tpu.memory_space<vmem>>, vector<1x8x128xf32>
    %16 = vector.shape_cast %15 : vector<1x8x128xf32> to vector<8x128xf32>
    %17 = vector.shape_cast %14 : vector<8x128xf32> to vector<1x8x128xf32>
    tpu.vector_store %arg4[%c0_9, %c0_10, %c0_11], %17 {strides = array<i32>} : memref<1x8x128xf32, #tpu.memory_space<vmem>>, vector<1x8x128xf32>,
    %c0_12 = arith.constant 0 : index
    %c0_13 = arith.constant 0 : index
    %c0_14 = arith.constant 0 : index
    %18 = vector.load %arg5[%c0_12, %c0_13, %c0_14] : memref<1x8x128xf32, #tpu.memory_space<vmem>>, vector<1x8x128xf32>
    %19 = vector.shape_cast %18 : vector<1x8x128xf32> to vector<8x128xf32>
    %20 = vector.shape_cast %3 : vector<8x128xf32> to vector<1x8x128xf32>
    %cst_15 = arith.constant dense<0.000000e+00> : vector<8x128xf32>
    %21 = vector.multi_reduction <add>, %20, %cst_15 [0] : vector<1x8x128xf32> to vector<8x128xf32>
    %22 = arith.addf %19, %21 : vector<8x128xf32>
    %c0_16 = arith.constant 0 : index
    %c0_17 = arith.constant 0 : index
    %c0_18 = arith.constant 0 : index
    %23 = vector.load %arg5[%c0_16, %c0_17, %c0_18] : memref<1x8x128xf32, #tpu.memory_space<vmem>>, vector<1x8x128xf32>
    %24 = vector.shape_cast %23 : vector<1x8x128xf32> to vector<8x128xf32>
    %25 = vector.shape_cast %22 : vector<8x128xf32> to vector<1x8x128xf32>
    tpu.vector_store %arg5[%c0_16, %c0_17, %c0_18], %25 {strides = array<i32>} : memref<1x8x128xf32, #tpu.memory_space<vmem>>, vector<1x8x128xf32>,
    %c0_19 = arith.constant 0 : index
    %c0_20 = arith.constant 0 : index
    %c0_21 = arith.constant 0 : index
    %26 = vector.load %arg6[%c0_19, %c0_20, %c0_21] : memref<1x8x128xf32, #tpu.memory_space<vmem>>, vector<1x8x128xf32>
    %27 = vector.shape_cast %26 : vector<1x8x128xf32> to vector<8x128xf32>
    %28 = vector.shape_cast %4 : vector<8x128xf32> to vector<1x8x128xf32>
    %cst_22 = arith.constant dense<0.000000e+00> : vector<8x128xf32>
    %29 = vector.multi_reduction <add>, %28, %cst_22 [0] : vector<1x8x128xf32> to vector<8x128xf32>
    %30 = arith.addf %27, %29 : vector<8x128xf32>
    %c0_23 = arith.constant 0 : index
    %c0_24 = arith.constant 0 : index
    %c0_25 = arith.constant 0 : index
    %31 = vector.load %arg6[%c0_23, %c0_24, %c0_25] : memref<1x8x128xf32, #tpu.memory_space<vmem>>, vector<1x8x128xf32>
    %32 = vector.shape_cast %31 : vector<1x8x128xf32> to vector<8x128xf32>
    %33 = vector.shape_cast %30 : vector<8x128xf32> to vector<1x8x128xf32>
    tpu.vector_store %arg6[%c0_23, %c0_24, %c0_25], %33 {strides = array<i32>} : memref<1x8x128xf32, #tpu.memory_space<vmem>>, vector<1x8x128xf32>,
    return
  }
  func.func @transform_0(%arg0: i32, %arg1: i32) -> (i32, i32) {
    %c1_i32 = arith.constant 1 : i32
    %0 = arith.muli %arg0, %c1_i32 : i32
    %1 = arith.addi %0, %arg1 : i32
    %c0_i32 = arith.constant 0 : i32
    %c0_i32_0 = arith.constant 0 : i32
    return %1, %c0_i32 : i32, i32
  }
  func.func @transform_1(%arg0: i32, %arg1: i32) -> (i32, i32) {
    %c1_i32 = arith.constant 1 : i32
    %0 = arith.muli %arg0, %c1_i32 : i32
    %1 = arith.addi %0, %arg1 : i32
    %c0_i32 = arith.constant 0 : i32
    %c0_i32_0 = arith.constant 0 : i32
    return %1, %c0_i32 : i32, i32
  }
  func.func @transform_2(%arg0: i32, %arg1: i32) -> (i32, i32, i32) {
    %c0_i32 = arith.constant 0 : i32
    %c0_i32_0 = arith.constant 0 : i32
    %c0_i32_1 = arith.constant 0 : i32
    return %arg0, %c0_i32, %c0_i32_0 : i32, i32, i32
  }
  func.func @transform_3(%arg0: i32, %arg1: i32) -> (i32, i32, i32) {
    %c0_i32 = arith.constant 0 : i32
    %c0_i32_0 = arith.constant 0 : i32
    %c0_i32_1 = arith.constant 0 : i32
    return %arg0, %c0_i32, %c0_i32_0 : i32, i32, i32
  }
  func.func @transform_4(%arg0: i32, %arg1: i32) -> (i32, i32, i32) {
    %c0_i32 = arith.constant 0 : i32
    %c0_i32_0 = arith.constant 0 : i32
    %c0_i32_1 = arith.constant 0 : i32
    return %arg0, %c0_i32, %c0_i32_0 : i32, i32, i32
  }
}

module attributes {stable_mosaic.version = 11 : i64} {
  func.func @_mse_kernel(%arg0: i32, %arg1: i32, %arg2: memref<16x128xf32, #tpu.memory_space<vmem>>, %arg3: memref<16x128xf32, #tpu.memory_space<vmem>>, %arg4: memref<1x8x128xf32, #tpu.memory_space<vmem>>) attributes {dimension_semantics = [#tpu.dimension_semantics<parallel>, #tpu.dimension_semantics<arbitrary>], iteration_bounds = array<i64: 1, 1>, scalar_prefetch = 0 : i64, scratch_operands = 0 : i64, tpu.core_type = #tpu.core_type<tc>, window_params = [{transform_indices = @transform_0, window_bounds = array<i64: 16, 128>}, {transform_indices = @transform_1, window_bounds = array<i64: 16, 128>}, {transform_indices = @transform_2, window_bounds = array<i64: 1, 8, 128>}]} {
    %c0_i32 = arith.constant 0 : i32
    %0 = arith.cmpi eq, %arg1, %c0_i32 : i32
    %1 = arith.extui %0 : i1 to i32
    %c0_i32_0 = arith.constant 0 : i32
    %2 = arith.cmpi ne, %1, %c0_i32_0 : i32
    scf.if %2 {
      %cst_10 = arith.constant 0.000000e+00 : f32
      %15 = vector.broadcast %cst_10 : f32 to vector<1x8x128xf32>
      %c0_11 = arith.constant 0 : index
      %c0_12 = arith.constant 0 : index
      %c0_13 = arith.constant 0 : index
      %16 = vector.load %arg4[%c0_11, %c0_12, %c0_13] : memref<1x8x128xf32, #tpu.memory_space<vmem>>, vector<1x8x128xf32>
      tpu.vector_store %arg4[%c0_11, %c0_12, %c0_13], %15 {strides = array<i32>} : memref<1x8x128xf32, #tpu.memory_space<vmem>>, vector<1x8x128xf32>,
    } else {
    }
    %c0 = arith.constant 0 : index
    %c0_1 = arith.constant 0 : index
    %3 = vector.load %arg2[%c0, %c0_1] : memref<16x128xf32, #tpu.memory_space<vmem>>, vector<16x128xf32>
    %c0_2 = arith.constant 0 : index
    %c0_3 = arith.constant 0 : index
    %4 = vector.load %arg3[%c0_2, %c0_3] : memref<16x128xf32, #tpu.memory_space<vmem>>, vector<16x128xf32>
    %5 = arith.subf %3, %4 : vector<16x128xf32>
    %6 = arith.mulf %5, %5 : vector<16x128xf32>
    %c0_4 = arith.constant 0 : index
    %c0_5 = arith.constant 0 : index
    %c0_6 = arith.constant 0 : index
    %7 = vector.load %arg4[%c0_4, %c0_5, %c0_6] : memref<1x8x128xf32, #tpu.memory_space<vmem>>, vector<1x8x128xf32>
    %8 = vector.shape_cast %7 : vector<1x8x128xf32> to vector<8x128xf32>
    %9 = vector.shape_cast %6 : vector<16x128xf32> to vector<2x8x128xf32>
    %cst = arith.constant dense<0.000000e+00> : vector<8x128xf32>
    %10 = vector.multi_reduction <add>, %9, %cst [0] : vector<2x8x128xf32> to vector<8x128xf32>
    %11 = arith.addf %8, %10 : vector<8x128xf32>
    %c0_7 = arith.constant 0 : index
    %c0_8 = arith.constant 0 : index
    %c0_9 = arith.constant 0 : index
    %12 = vector.load %arg4[%c0_7, %c0_8, %c0_9] : memref<1x8x128xf32, #tpu.memory_space<vmem>>, vector<1x8x128xf32>
    %13 = vector.shape_cast %12 : vector<1x8x128xf32> to vector<8x128xf32>
    %14 = vector.shape_cast %11 : vector<8x128xf32> to vector<1x8x128xf32>
    tpu.vector_store %arg4[%c0_7, %c0_8, %c0_9], %14 {strides = array<i32>} : memref<1x8x128xf32, #tpu.memory_space<vmem>>, vector<1x8x128xf32>,
    return
  }
  func.func @transform_0(%arg0: i32, %arg1: i32) -> (i32, i32) {
    %c1_i32 = arith.constant 1 : i32
    %0 = arith.muli %arg0, %c1_i32 : i32
    %1 = arith.addi %0, %arg1 : i32
    %c0_i32 = arith.constant 0 : i32
    %c0_i32_0 = arith.constant 0 : i32
    return %1, %c0_i32 : i32, i32
  }
  func.func @transform_1(%arg0: i32, %arg1: i32) -> (i32, i32) {
    %c1_i32 = arith.constant 1 : i32
    %0 = arith.muli %arg0, %c1_i32 : i32
    %1 = arith.addi %0, %arg1 : i32
    %c0_i32 = arith.constant 0 : i32
    %c0_i32_0 = arith.constant 0 : i32
    return %1, %c0_i32 : i32, i32
  }
  func.func @transform_2(%arg0: i32, %arg1: i32) -> (i32, i32, i32) {
    %c0_i32 = arith.constant 0 : i32
    %c0_i32_0 = arith.constant 0 : i32
    %c0_i32_1 = arith.constant 0 : i32
    return %arg0, %c0_i32, %c0_i32_0 : i32, i32, i32
  }
}

</mosaic_0001>

<llo_original>
// kernel: _forward_impl.3
$region0: #{_forward_impl.3}
  #allocation0 [shape = 'u32[]', space=smem, size = 0x4, offset = 0x4, fixed_abs, tag = 'smem constant byte address 0x4 - core index']
  #allocation1 [shape = 'u32[72,128]{1,0:T(1,128)}', space=vmem, size = 0x9000, scoped, tag = 'internal scratch']
  %s0 = inlined_call_operand.vmem [shape: f32[8,128], index: 0, kind: input, shape index: {}]
  %s1 = inlined_call_operand.vmem [shape: f32[8,128], index: 1, kind: input, shape index: {}]
  %s2 = inlined_call_operand.vmem [shape: f32[1,8,128], index: 2, kind: output, shape index: {0}]
  %s3 = inlined_call_operand.vmem [shape: f32[1,8,128], index: 3, kind: output, shape index: {1}]
  %s4 = inlined_call_operand.vmem [shape: f32[1,8,128], index: 4, kind: output, shape index: {2}]
  %5 = xla_tuple %s2, %s3, %s4
  %s6 = sld [smem:[#allocation0]]
  $region38: #{_forward_impl.3} parent=0
    _
  %s8 = ssub.s32 1, %s6
  %s9 = scalar_select 0, %s8, %s6
  // Predicated region
  $region2: #{_forward_impl.3} parent=0 // pred_check
    _
  $region3: #{_forward_impl.3} parent=0 // pred_check_branch
    %11 = sbr.rel (0) target = $region5
  $region4: #{_forward_impl.3} parent=0 // pred_region
    %s12 = sadd.s32 0, 0
    %p13 = scmp.lt.s32.totalorder %s12, 0
    %s14 = scalar_select %p13, %s12, 0
    %s15 = smul.addr %s14, 8
    %s16 = scalar_lea.vmem %s0, %s15
    %s17 = sadd.s32 0, 0
  $region5: #{_forward_impl.3} parent=0 // pred_fallthru
    _
  // Predicated region
  $region6: #{_forward_impl.3} parent=0 // pred_check
    _
  $region7: #{_forward_impl.3} parent=0 // pred_check_branch
    %19 = sbr.rel (0) target = $region9
  $region8: #{_forward_impl.3} parent=0 // pred_region
    %s20 = sadd.s32 0, 0
    %p21 = scmp.lt.s32.totalorder %s20, 0
    %s22 = scalar_select %p21, %s20, 0
    %s23 = smul.addr %s22, 8
    %s24 = scalar_lea.vmem %s1, %s23
    %s25 = sadd.s32 0, 0
  $region9: #{_forward_impl.3} parent=0 // pred_fallthru
    _
  %s26 = sadd.s32 0, 0
  %p27 = scmp.lt.s32.totalorder %s26, 0
  %s28 = scalar_select %p27, %s26, 0
  %s29 = smul.addr %s28, 8
  %s30 = scalar_lea.vmem %s0, %s29
  %s31 = sadd.s32 0, 0
  %p32 = scmp.lt.s32.totalorder %s31, 0
  %s33 = scalar_select %p32, %s31, 0
  %s34 = smul.addr %s33, 8
  %s35 = scalar_lea.vmem %s1, %s34
  %s36 = sadd.s32 0, 0
  %p37 = scmp.lt.s32.totalorder %s36, 0
  %s38 = scalar_select %p37, %s36, 0
  %s39 = smul.addr %s38, 8
  %s40 = scalar_lea.vmem %s0, %s39
  %s41 = sadd.s32 0, 0
  %s42 = sadd.s32 0, 0
  %p43 = scmp.lt.s32.totalorder %s42, 0
  %s44 = scalar_select %p43, %s42, 0
  %s45 = smul.addr %s44, 8
  %s46 = scalar_lea.vmem %s1, %s45
  %s47 = sadd.s32 0, 0
  %p48 = scmp.eq.s32.totalorder 0, 0
  // Predicated region
  $region10: #{_forward_impl.3} parent=0 // pred_check
    %p49 = pneg %p48
  $region11: #{_forward_impl.3} parent=0 // pred_check_branch
    %51 = sbr.rel (%p49) target = $region13
  $region12: #{_forward_impl.3} parent=0 // pred_region
    %52 = vst [vmem:[%s2] sm:$0xff] 0.0
    %53 = vst [vmem:[%s3] sm:$0xff] 0.0
    %54 = vst [vmem:[%s4] sm:$0xff] 0.0
  $region13: #{_forward_impl.3} parent=0 // pred_fallthru
    _
  %v55 = vld [vmem:[%s40] sm:$0xff]
  %v56 = vld [vmem:[%s46] sm:$0xff]
  %v57 = vsub.f32 %v55, %v56
  %v58 = vsub.f32 %v57, 7.9933534
  %v59 = vmax.f32 %v58, 0.0
  %v60 = vld [vmem:[%s2] sm:$0xff]
  %v61 = vadd.f32 %v59, 0.0
  %v62 = vadd.f32 %v60, %v61
  %63 = vst [vmem:[%s2] sm:$0xff] %v62
  %v64 = vld [vmem:[%s3] sm:$0xff]
  %v65 = vadd.f32 %v55, 0.0
  %v66 = vadd.f32 %v64, %v65
  %67 = vst [vmem:[%s3] sm:$0xff] %v66
  %v68 = vld [vmem:[%s4] sm:$0xff]
  %v69 = vadd.f32 %v56, 0.0
  %v70 = vadd.f32 %v68, %v69
  %71 = vst [vmem:[%s4] sm:$0xff] %v70
  // Predicated region
  $region14: #{_forward_impl.3} parent=0 // pred_check
    _
  $region15: #{_forward_impl.3} parent=0 // pred_check_branch
    %73 = sbr.rel (0) target = $region17
  $region16: #{_forward_impl.3} parent=0 // pred_region
    _
  $region17: #{_forward_impl.3} parent=0 // pred_fallthru
    _
  // Predicated region
  $region18: #{_forward_impl.3} parent=0 // pred_check
    _
  $region19: #{_forward_impl.3} parent=0 // pred_check_branch
    %75 = sbr.rel (0) target = $region21
  $region20: #{_forward_impl.3} parent=0 // pred_region
    _
  $region21: #{_forward_impl.3} parent=0 // pred_fallthru
    _
  // Predicated region
  $region22: #{_forward_impl.3} parent=0 // pred_check
    _
  $region23: #{_forward_impl.3} parent=0 // pred_check_branch
    %77 = sbr.rel (0) target = $region25
  $region24: #{_forward_impl.3} parent=0 // pred_region
    _
  $region25: #{_forward_impl.3} parent=0 // pred_fallthru
    _
  // Predicated region
  $region26: #{_forward_impl.3} parent=0 // pred_check
    _
  $region27: #{_forward_impl.3} parent=0 // pred_check_branch
    %79 = sbr.rel (0) target = $region29
  $region28: #{_forward_impl.3} parent=0 // pred_region
    _
  $region29: #{_forward_impl.3} parent=0 // pred_fallthru
    _
  // Predicated region
  $region30: #{_forward_impl.3} parent=0 // pred_check
    _
  $region31: #{_forward_impl.3} parent=0 // pred_check_branch
    %81 = sbr.rel (0) target = $region33
  $region32: #{_forward_impl.3} parent=0 // pred_region
    _
  $region33: #{_forward_impl.3} parent=0 // pred_fallthru
    _
  // Predicated region
  $region34: #{_forward_impl.3} parent=0 // pred_check
    _
  $region35: #{_forward_impl.3} parent=0 // pred_check_branch
    %83 = sbr.rel (0) target = $region37
  $region36: #{_forward_impl.3} parent=0 // pred_region
    _
  $region37: #{_forward_impl.3} parent=0 // pred_fallthru
    _

// kernel: _forward_impl.2
$region0: #{_forward_impl.2}
  #allocation0 [shape = 'u32[]', space=smem, size = 0x4, offset = 0x4, fixed_abs, tag = 'smem constant byte address 0x4 - core index']
  #allocation1 [shape = 'u32[72,128]{1,0:T(1,128)}', space=vmem, size = 0x9000, scoped, tag = 'internal scratch']
  %s0 = inlined_call_operand.vmem [shape: f32[16,128], index: 0, kind: input, shape index: {}]
  %s1 = inlined_call_operand.vmem [shape: f32[16,128], index: 1, kind: input, shape index: {}]
  %s2 = inlined_call_operand.vmem [shape: f32[1,8,128], index: 2, kind: output, shape index: {}]
  %s3 = sld [smem:[#allocation0]]
  $region22: #{_forward_impl.2} parent=0
    _
  %s5 = ssub.s32 1, %s3
  %s6 = scalar_select 0, %s5, %s3
  // Predicated region
  $region2: #{_forward_impl.2} parent=0 // pred_check
    _
  $region3: #{_forward_impl.2} parent=0 // pred_check_branch
    %8 = sbr.rel (0) target = $region5
  $region4: #{_forward_impl.2} parent=0 // pred_region
    %s9 = sadd.s32 0, 0
    %s10 = smul.u32 2, %s9
    %p11 = scmp.lt.s32.totalorder %s10, 1
    %s12 = scalar_select %p11, %s10, 1
    %s13 = smul.addr %s12, 8
    %s14 = scalar_lea.vmem %s0, %s13
    %s15 = sadd.s32 0, 0
    %s16 = smul.u32 2, %s15
  $region5: #{_forward_impl.2} parent=0 // pred_fallthru
    _
  // Predicated region
  $region6: #{_forward_impl.2} parent=0 // pred_check
    _
  $region7: #{_forward_impl.2} parent=0 // pred_check_branch
    %18 = sbr.rel (0) target = $region9
  $region8: #{_forward_impl.2} parent=0 // pred_region
    %s19 = sadd.s32 0, 0
    %s20 = smul.u32 2, %s19
    %p21 = scmp.lt.s32.totalorder %s20, 1
    %s22 = scalar_select %p21, %s20, 1
    %s23 = smul.addr %s22, 8
    %s24 = scalar_lea.vmem %s1, %s23
    %s25 = sadd.s32 0, 0
    %s26 = smul.u32 2, %s25
  $region9: #{_forward_impl.2} parent=0 // pred_fallthru
    _
  %s27 = sadd.s32 0, 0
  %s28 = smul.u32 2, %s27
  %p29 = scmp.lt.s32.totalorder %s28, 1
  %s30 = scalar_select %p29, %s28, 1
  %s31 = smul.addr %s30, 8
  %s32 = scalar_lea.vmem %s0, %s31
  %s33 = sadd.s32 0, 0
  %s34 = smul.u32 2, %s33
  %p35 = scmp.lt.s32.totalorder %s34, 1
  %s36 = scalar_select %p35, %s34, 1
  %s37 = smul.addr %s36, 8
  %s38 = scalar_lea.vmem %s1, %s37
  %s39 = sadd.s32 0, 0
  %s40 = smul.u32 2, %s39
  %p41 = scmp.lt.s32.totalorder %s40, 1
  %s42 = scalar_select %p41, %s40, 1
  %s43 = smul.addr %s42, 8
  %s44 = scalar_lea.vmem %s0, %s43
  %s45 = sadd.s32 0, 0
  %s46 = smul.u32 2, %s45
  %s47 = sadd.s32 0, 0
  %s48 = smul.u32 2, %s47
  %p49 = scmp.lt.s32.totalorder %s48, 1
  %s50 = scalar_select %p49, %s48, 1
  %s51 = smul.addr %s50, 8
  %s52 = scalar_lea.vmem %s1, %s51
  %s53 = sadd.s32 0, 0
  %s54 = smul.u32 2, %s53
  %p55 = scmp.eq.s32.totalorder 0, 0
  // Predicated region
  $region10: #{_forward_impl.2} parent=0 // pred_check
    %p56 = pneg %p55
  $region11: #{_forward_impl.2} parent=0 // pred_check_branch
    %58 = sbr.rel (%p56) target = $region13
  $region12: #{_forward_impl.2} parent=0 // pred_region
    %59 = vst [vmem:[%s2] sm:$0xff] 0.0
  $region13: #{_forward_impl.2} parent=0 // pred_fallthru
    _
  %v60 = vld [vmem:[%s44] sm:$0xff]
  %v61 = vld [vmem:[%s44 + $0x8] sm:$0xff]
  %v62 = vld [vmem:[%s52] sm:$0xff]
  %v63 = vld [vmem:[%s52 + $0x8] sm:$0xff]
  %v64 = vsub.f32 %v60, %v62
  %v65 = vsub.f32 %v61, %v63
  %v66 = vmul.f32 %v64, %v64
  %v67 = vmul.f32 %v65, %v65
  %v68 = vld [vmem:[%s2] sm:$0xff]
  %v69 = vadd.f32 %v66, %v67
  %v70 = vadd.f32 %v68, %v69
  %71 = vst [vmem:[%s2] sm:$0xff] %v70
  // Predicated region
  $region14: #{_forward_impl.2} parent=0 // pred_check
    _
  $region15: #{_forward_impl.2} parent=0 // pred_check_branch
    %73 = sbr.rel (0) target = $region17
  $region16: #{_forward_impl.2} parent=0 // pred_region
    _
  $region17: #{_forward_impl.2} parent=0 // pred_fallthru
    _
  // Predicated region
  $region18: #{_forward_impl.2} parent=0 // pred_check
    _
  $region19: #{_forward_impl.2} parent=0 // pred_check_branch
    %75 = sbr.rel (0) target = $region21
  $region20: #{_forward_impl.2} parent=0 // pred_region
    _
  $region21: #{_forward_impl.2} parent=0 // pred_fallthru
    _

</llo_original>
